<compile_context>
chip_gen: v7x
topology: tpu7x:2x2x1
jax: 0.10.0
libtpu: 0.0.40
codegen_flags: <defaults>
</compile_context>

<pallas_src>
import math
from typing import NamedTuple

import jax
import jax.numpy as jnp
from jax.experimental import pallas as pl
from jax.experimental.pallas import tpu as pltpu


def _round_up(v, m):
    return (v + m - 1) // m * m


# --------------------------------------------------------------------------- #
# Kernels
# --------------------------------------------------------------------------- #

def _sae_kernel_single(x_ref, w_enc_ref, b_enc_ref, w_dec_ref, b_dec_ref,
                       out_ref):
    """Whole feature dim in one chunk: weights stay VMEM-resident (DMAed once,
    since their block index never changes across the 1-D batch grid)."""
    pre = jnp.dot(x_ref[...], w_enc_ref[...],
                  preferred_element_type=jnp.float32) + b_enc_ref[...]
    feats = jnp.maximum(pre, 0.0).astype(jnp.bfloat16)
    dec = jnp.dot(feats, w_dec_ref[...],
                  preferred_element_type=jnp.float32) + b_dec_ref[...]
    out_ref[...] = dec.astype(out_ref.dtype)


def _sae_kernel_multi_accum_out(x_ref, w_enc_ref, b_enc_ref, w_dec_ref,
                                b_dec_ref, out_ref):
    """Feature-chunked reduction; accumulate directly into the resident f32
    output tile (out BlockSpec returns the same block for every feature step).
    b_dec is added exactly once, on the first chunk."""
    f = pl.program_id(1)
    pre = jnp.dot(x_ref[...], w_enc_ref[...],
                  preferred_element_type=jnp.float32) + b_enc_ref[...]
    feats = jnp.maximum(pre, 0.0).astype(jnp.bfloat16)
    contrib = jnp.dot(feats, w_dec_ref[...],
                      preferred_element_type=jnp.float32)

    @pl.when(f == 0)
    def _first():
        out_ref[...] = contrib + b_dec_ref[...]

    @pl.when(f > 0)
    def _rest():
        out_ref[...] += contrib


def _sae_kernel_multi_scratch(x_ref, w_enc_ref, b_enc_ref, w_dec_ref,
                              b_dec_ref, out_ref, acc_ref):
    """Feature-chunked reduction with an f32 scratch accumulator.  Only used
    when the requested output dtype is not f32 (e.g. bf16 output)."""
    f = pl.program_id(1)
    pre = jnp.dot(x_ref[...], w_enc_ref[...],
                  preferred_element_type=jnp.float32) + b_enc_ref[...]
    feats = jnp.maximum(pre, 0.0).astype(jnp.bfloat16)
    contrib = jnp.dot(feats, w_dec_ref[...],
                      preferred_element_type=jnp.float32)

    @pl.when(f == 0)
    def _init():
        acc_ref[...] = jnp.zeros_like(acc_ref)

    acc_ref[...] += contrib

    @pl.when(f == pl.num_programs(1) - 1)
    def _fin():
        out_ref[...] = (acc_ref[...] + b_dec_ref[...]).astype(out_ref.dtype)


# --------------------------------------------------------------------------- #
# Hardware-aware tiling
# --------------------------------------------------------------------------- #

def _device_kind():
    try:
        return jax.devices()[0].device_kind.lower()
    except Exception:
        return ""


def _vmem_capacity_bytes():
    cap = 64 << 20  # conservative default: v7x per-TensorCore VMEM
    try:
        info = pltpu.get_tpu_info()
        cap = int(getattr(info, "vmem_capacity_bytes", cap)) or cap
    except Exception:
        pass
    return cap


def _pick_tile_features(n_features_p, desired):
    """Largest multiple of 128 that divides n_features_p and is <= desired."""
    units = n_features_p // 128
    desired_units = max(1, desired // 128)
    best = 1
    for k in range(1, units + 1):
        if units % k == 0 and k <= desired_units:
            best = k
    return best * 128


def _select_tiles(batch, n_inputs_p, n_features_p, out_bytes,
                  requested_tile_batch=None, requested_tile_features=None):
    kind = _device_kind()
    is_v7 = ("v7" in kind) or ("7x" in kind)
    is_v6 = "v6" in kind
    capacity = _vmem_capacity_bytes()
    margin = 4 << 20                              # Mosaic internal scratch headroom
    budget = int(capacity * 0.85) - margin

    # --- batch tile: multiple of 16 (bf16 sublane packing), minimal padding.
    if requested_tile_batch is not None:
        tile_batch = _round_up(
            max(16, min(requested_tile_batch, _round_up(batch, 16))), 16)
    elif batch <= 128:
        tile_batch = max(16, _round_up(batch, 16))
    else:
        # v6e needs more weight reuse per streamed byte (~650 flop/B roofline),
        # so prefer 512-row tiles for large batches; 256 elsewhere.
        target = 512 if (is_v6 and batch >= 512) else 256
        cands = [c for c in (128, 256, 384, 512) if c <= target] or [128]
        tile_batch = min(cands, key=lambda c: (_round_up(batch, c) - batch, -c))
    batch_p = _round_up(batch, tile_batch)

    # v7x has 2 TensorCores fed via the "parallel" batch axis: keep >= 2 tiles.
    if (is_v7 and requested_tile_batch is None
            and batch_p // tile_batch < 2 and tile_batch >= 32):
        tile_batch = max(16, _round_up(tile_batch // 2, 16))
        batch_p = _round_up(batch, tile_batch)

    # --- VMEM footprint with default double buffering (no Buffered(1) needed).
    def footprint(tb, tf):
        scratch = (tf != n_features_p) and (out_bytes != 4)
        x_b = 2 * tb * n_inputs_p * 2                     # bf16 x blocks
        w_b = 2 * 2 * tf * n_inputs_p * 2                 # bf16 W_enc + W_dec blocks
        b_b = 2 * 8 * tf * 4 + 2 * 8 * n_inputs_p * 4     # biases ((1,n) pads to 8 sublanes)
        o_b = 2 * tb * n_inputs_p * out_bytes             # output blocks
        a_b = tb * n_inputs_p * 4 if scratch else 0       # f32 scratch (bf16 out only)
        return x_b + w_b + b_b + o_b + a_b

    # --- feature tile
    if requested_tile_features is not None:
        desired = max(128, requested_tile_features)
    elif footprint(tile_batch, n_features_p) <= budget:
        desired = n_features_p          # full bf16 weight set fits -> resident
    else:
        desired = 512 if is_v7 else 1024  # v7x only has 64 MiB VMEM per TC

    tile_features = _pick_tile_features(n_features_p, desired)
    while footprint(tile_batch, tile_features) > budget and tile_features > 128:
        tile_features = _pick_tile_features(n_features_p, tile_features // 2)
    while footprint(tile_batch, tile_features) > budget and tile_batch > 16:
        tile_batch = max(16, _round_up(tile_batch // 2, 16))
        batch_p = _round_up(batch, tile_batch)

    vmem_limit = min(footprint(tile_batch, tile_features) + margin,
                     int(capacity * 0.85))
    vmem_limit = max(vmem_limit, 16 << 20)
    return tile_batch, tile_features, batch_p, int(vmem_limit)


# --------------------------------------------------------------------------- #
# pallas_call builder
# --------------------------------------------------------------------------- #

def _build_sae_call(batch_p, n_inputs_p, n_features_p, tile_batch,
                    tile_features, out_dtype, vmem_limit_bytes):
    out_shape = jax.ShapeDtypeStruct((batch_p, n_inputs_p), out_dtype)
    single_chunk = (tile_features == n_features_p)

    if single_chunk:
        grid = (batch_p // tile_batch,)
        in_specs = [
            pl.BlockSpec((tile_batch, n_inputs_p), lambda i: (i, 0)),
            pl.BlockSpec((n_inputs_p, n_features_p), lambda i: (0, 0)),
            pl.BlockSpec((1, n_features_p), lambda i: (0, 0)),
            pl.BlockSpec((n_features_p, n_inputs_p), lambda i: (0, 0)),
            pl.BlockSpec((1, n_inputs_p), lambda i: (0, 0)),
        ]
        out_specs = pl.BlockSpec((tile_batch, n_inputs_p), lambda i: (i, 0))
        kernel = _sae_kernel_single
        scratch = []
        semantics = ("parallel",)
    else:
        grid = (batch_p // tile_batch, n_features_p // tile_features)
        in_specs = [
            pl.BlockSpec((tile_batch, n_inputs_p), lambda i, f: (i, 0)),
            pl.BlockSpec((n_inputs_p, tile_features), lambda i, f: (0, f)),
            pl.BlockSpec((1, tile_features), lambda i, f: (0, f)),
            pl.BlockSpec((tile_features, n_inputs_p), lambda i, f: (f, 0)),
            pl.BlockSpec((1, n_inputs_p), lambda i, f: (0, 0)),
        ]
        out_specs = pl.BlockSpec((tile_batch, n_inputs_p), lambda i, f: (i, 0))
        semantics = ("parallel", "arbitrary")
        if jnp.dtype(out_dtype) == jnp.dtype(jnp.float32):
            kernel = _sae_kernel_multi_accum_out
            scratch = []
        else:
            kernel = _sae_kernel_multi_scratch
            scratch = [pltpu.VMEM((tile_batch, n_inputs_p), jnp.float32)]

    return pl.pallas_call(
        kernel,
        out_shape=out_shape,
        grid_spec=pltpu.PrefetchScalarGridSpec(
            num_scalar_prefetch=0,
            grid=grid,
            in_specs=in_specs,
            out_specs=out_specs,
            scratch_shapes=scratch,
        ),
        compiler_params=pltpu.CompilerParams(
            dimension_semantics=semantics,
            vmem_limit_bytes=int(vmem_limit_bytes),
        ),
    )


# --------------------------------------------------------------------------- #
# Parameter prep (one-time) + forward wrapper
# --------------------------------------------------------------------------- #

class SAEParams(NamedTuple):
    w_enc: jax.Array    # (n_inputs_p, n_features_p) bf16
    b_enc: jax.Array    # (1, n_features_p)          f32
    w_dec: jax.Array    # (n_features_p, n_inputs_p) bf16
    b_dec: jax.Array    # (1, n_inputs_p)            f32
    n_inputs: int
    n_features: int


def prepare_sae_params(w_enc, b_enc, w_dec, b_dec):
    """One-time padding + bf16 cast of the SAE parameters (hoisted out of the
    per-call path; re-run only when the parameters change)."""
    n_inputs, n_features = w_enc.shape
    assert w_dec.shape == (n_features, n_inputs)
    assert b_enc.shape == (n_features,)
    assert b_dec.shape == (n_inputs,)

    n_inputs_p = _round_up(n_inputs, 128)
    n_features_p = _round_up(n_features, 128)
    bf16, f32 = jnp.bfloat16, jnp.float32

    w_enc_p = jnp.zeros((n_inputs_p, n_features_p), bf16).at[
        :n_inputs, :n_features].set(w_enc.astype(bf16))
    w_dec_p = jnp.zeros((n_features_p, n_inputs_p), bf16).at[
        :n_features, :n_inputs].set(w_dec.astype(bf16))
    b_enc_p = jnp.zeros((1, n_features_p), f32).at[0, :n_features].set(
        b_enc.astype(f32))
    b_dec_p = jnp.zeros((1, n_inputs_p), f32).at[0, :n_inputs].set(
        b_dec.astype(f32))
    return SAEParams(w_enc_p, b_enc_p, w_dec_p, b_dec_p, n_inputs, n_features)


def sae_forward(x, params: SAEParams, *, tile_batch=None, tile_features=None,
                out_dtype=jnp.float32):
    """Fused SAE forward (encode -> ReLU -> decode) as one Pallas TPU kernel.

    bf16 MXU with f32 accumulation; bias adds and ReLU in f32.  Tile sizes and
    the VMEM limit are derived per TPU generation unless explicitly given.
    """
    batch, n_inputs = x.shape
    if n_inputs != params.n_inputs:
        raise ValueError(f"x has {n_inputs} inputs, params expect {params.n_inputs}")
    n_inputs_p, n_features_p = params.w_enc.shape
    out_dtype = jnp.dtype(out_dtype)

    tb, tf, batch_p, vmem_limit = _select_tiles(
        batch, n_inputs_p, n_features_p, out_dtype.itemsize,
        requested_tile_batch=tile_batch, requested_tile_features=tile_features)

    # Pad + pre-cast x to bf16 (the padded copy is made anyway; bf16 halves it).
    x_p = jnp.zeros((batch_p, n_inputs_p), jnp.bfloat16).at[
        :batch, :n_inputs].set(x.astype(jnp.bfloat16))

    call = _build_sae_call(batch_p, n_inputs_p, n_features_p, tb, tf,
                           out_dtype, vmem_limit)
    out_p = call(x_p, params.w_enc, params.b_enc, params.w_dec, params.b_dec)
    return out_p[:batch, :n_inputs]


# --------------------------------------------------------------------------- #
# Reference / init helpers
# --------------------------------------------------------------------------- #

def init_sae_params(key, n_inputs, n_features):
    """Deterministic replica of SparseAutoencoder.__init__ weight init."""
    scaler = 1.0 / math.sqrt(n_features / n_inputs * 0.5 + 1.0)
    w0 = jax.random.normal(key, (n_features, n_inputs), dtype=jnp.float32)
    norms = jnp.linalg.norm(w0, axis=1, keepdims=True)
    w0 = w0 / norms * scaler
    W_enc = w0.T                                   # (n_inputs, n_features)
    b_enc = jnp.zeros((n_features,), jnp.float32)
    W_dec = w0                                     # (n_features, n_inputs)
    b_dec = jnp.zeros((n_inputs,), jnp.float32)
    return W_enc, b_enc, W_dec, b_dec


def sae_forward_ref(x, w_enc, b_enc, w_dec, b_dec, mxu_dtype=jnp.bfloat16):
    """Reference with the same dtype path (bf16 MXU, f32 accumulation)."""
    xm = x.astype(mxu_dtype)
    feats = jnp.maximum(
        jnp.dot(xm, w_enc.astype(mxu_dtype),
                preferred_element_type=jnp.float32) + b_enc, 0.0)
    return jnp.dot(feats.astype(mxu_dtype), w_dec.astype(mxu_dtype),
                   preferred_element_type=jnp.float32) + b_dec


# TODO(synk): compute_loss / normalize_decoder_weights / export are training &
# serialization utilities, not part of forward(); not implemented as kernels.

if __name__ == "__main__":
    # Deliberately non-aligned small shapes to exercise padding, ragged batch
    # tiles, and both the single-chunk and multi-chunk feature paths.
    n_inputs, n_features, batch = 100, 192, 40

    key = jax.random.PRNGKey(0)
    k_w, k_x, k_be, k_bd = jax.random.split(key, 4)
    W_enc, b_enc, W_dec, b_dec = init_sae_params(k_w, n_inputs, n_features)
    # Non-zero biases so the bias-add paths are actually validated.
    b_enc = 0.1 * jax.random.normal(k_be, (n_features,), jnp.float32)
    b_dec = 0.1 * jax.random.normal(k_bd, (n_inputs,), jnp.float32)
    x = jax.random.normal(k_x, (batch, n_inputs), dtype=jnp.float32)

    params = prepare_sae_params(W_enc, b_enc, W_dec, b_dec)   # one-time prep
    ref = sae_forward_ref(x, W_enc, b_enc, W_dec, b_dec)

    # 1) Hardware-adaptive defaults -> weights-resident single-chunk path.
    out_auto = jax.block_until_ready(sae_forward(x, params))
    assert out_auto.shape == (batch, n_inputs)
    err = float(jnp.max(jnp.abs(out_auto - ref)))
    assert jnp.allclose(out_auto, ref, atol=1e-2, rtol=1e-2), \
        f"auto path mismatch vs reference (max abs err {err})"

    # 2) Forced tiny tiles -> 3 batch tiles x 2 feature chunks
    #    (accumulate-into-output reduction path).
    out_tiled = jax.block_until_ready(
        sae_forward(x, params, tile_batch=16, tile_features=128))
    err = float(jnp.max(jnp.abs(out_tiled - ref)))
    assert jnp.allclose(out_tiled, ref, atol=1e-2, rtol=1e-2), \
        f"tiled path mismatch vs reference (max abs err {err})"

    # 3) bf16 output option on the chunked path (scratch-accumulator kernel).
    out_bf16 = jax.block_until_ready(
        sae_forward(x, params, tile_batch=16, tile_features=128,
                    out_dtype=jnp.bfloat16))
    out_bf16_f32 = out_bf16.astype(jnp.float32)
    err = float(jnp.max(jnp.abs(out_bf16_f32 - ref)))
    assert jnp.allclose(out_bf16_f32, ref, atol=3e-2, rtol=3e-2), \
        f"bf16-output path mismatch vs reference (max abs err {err})"

    print("KERNEL_OK")
</pallas_src>

<mosaic_0001>
module attributes {stable_mosaic.version = 11 : i64} {
  func.func @_sae_kernel_single(%arg0: i32, %arg1: memref<48x128xbf16, #tpu.memory_space<vmem>>, %arg2: memref<128x256xbf16, #tpu.memory_space<vmem>>, %arg3: memref<1x256xf32, #tpu.memory_space<vmem>>, %arg4: memref<256x128xbf16, #tpu.memory_space<vmem>>, %arg5: memref<1x128xf32, #tpu.memory_space<vmem>>, %arg6: memref<48x128xf32, #tpu.memory_space<vmem>>) attributes {dimension_semantics = [#tpu.dimension_semantics<parallel>], iteration_bounds = array<i64: 1>, scalar_prefetch = 0 : i64, scratch_operands = 0 : i64, tpu.core_type = #tpu.core_type<tc>, window_params = [{transform_indices = @transform_0, window_bounds = array<i64: 48, 128>}, {pipeline_mode = #tpu.pipeline_mode<synchronous>, transform_indices = @transform_1, window_bounds = array<i64: 128, 256>}, {pipeline_mode = #tpu.pipeline_mode<synchronous>, transform_indices = @transform_2, window_bounds = array<i64: 1, 256>}, {pipeline_mode = #tpu.pipeline_mode<synchronous>, transform_indices = @transform_3, window_bounds = array<i64: 256, 128>}, {pipeline_mode = #tpu.pipeline_mode<synchronous>, transform_indices = @transform_4, window_bounds = array<i64: 1, 128>}, {transform_indices = @transform_5, window_bounds = array<i64: 48, 128>}]} {
    %c0 = arith.constant 0 : index
    %c0_0 = arith.constant 0 : index
    %0 = vector.load %arg1[%c0, %c0_0] : memref<48x128xbf16, #tpu.memory_space<vmem>>, vector<48x128xbf16>
    %c0_1 = arith.constant 0 : index
    %c0_2 = arith.constant 0 : index
    %1 = vector.load %arg2[%c0_1, %c0_2] : memref<128x256xbf16, #tpu.memory_space<vmem>>, vector<128x256xbf16>
    %cst = arith.constant dense<0.000000e+00> : vector<48x256xf32>
    %2 = tpu.matmul %0, %1, %cst {dimension_numbers = #tpu.dot_dimension_numbers<[1], [0], [0], [1], [0, 0, 1, 1], [], []>} : vector<48x128xbf16>, vector<128x256xbf16>, vector<48x256xf32> -> vector<48x256xf32>
    %c0_3 = arith.constant 0 : index
    %c0_4 = arith.constant 0 : index
    %3 = vector.load %arg3[%c0_3, %c0_4] : memref<1x256xf32, #tpu.memory_space<vmem>>, vector<1x256xf32>
    %4 = vector.broadcast %3 : vector<1x256xf32> to vector<48x256xf32>
    %5 = arith.addf %2, %4 : vector<48x256xf32>
    %cst_5 = arith.constant 0.000000e+00 : f32
    %6 = vector.broadcast %cst_5 : f32 to vector<48x256xf32>
    %7 = arith.maximumf %5, %6 : vector<48x256xf32>
    %8 = arith.truncf %7 : vector<48x256xf32> to vector<48x256xbf16>
    %c0_6 = arith.constant 0 : index
    %c0_7 = arith.constant 0 : index
    %9 = vector.load %arg4[%c0_6, %c0_7] : memref<256x128xbf16, #tpu.memory_space<vmem>>, vector<256x128xbf16>
    %cst_8 = arith.constant dense<0.000000e+00> : vector<48x128xf32>
    %10 = tpu.matmul %8, %9, %cst_8 {dimension_numbers = #tpu.dot_dimension_numbers<[1], [0], [0], [1], [0, 0, 1, 1], [], []>} : vector<48x256xbf16>, vector<256x128xbf16>, vector<48x128xf32> -> vector<48x128xf32>
    %c0_9 = arith.constant 0 : index
    %c0_10 = arith.constant 0 : index
    %11 = vector.load %arg5[%c0_9, %c0_10] : memref<1x128xf32, #tpu.memory_space<vmem>>, vector<1x128xf32>
    %12 = vector.broadcast %11 : vector<1x128xf32> to vector<48x128xf32>
    %13 = arith.addf %10, %12 : vector<48x128xf32>
    %c0_11 = arith.constant 0 : index
    %c0_12 = arith.constant 0 : index
    %14 = vector.load %arg6[%c0_11, %c0_12] : memref<48x128xf32, #tpu.memory_space<vmem>>, vector<48x128xf32>
    tpu.vector_store %arg6[%c0_11, %c0_12], %13 {strides = array<i32>} : memref<48x128xf32, #tpu.memory_space<vmem>>, vector<48x128xf32>,
    return
  }
  func.func @transform_0(%arg0: i32) -> (i32, i32) {
    %c0_i32 = arith.constant 0 : i32
    %c0_i32_0 = arith.constant 0 : i32
    return %arg0, %c0_i32 : i32, i32
  }
  func.func @transform_1(%arg0: i32) -> (i32, i32) {
    %c0_i32 = arith.constant 0 : i32
    %c0_i32_0 = arith.constant 0 : i32
    %c0_i32_1 = arith.constant 0 : i32
    return %c0_i32, %c0_i32_0 : i32, i32
  }
  func.func @transform_2(%arg0: i32) -> (i32, i32) {
    %c0_i32 = arith.constant 0 : i32
    %c0_i32_0 = arith.constant 0 : i32
    %c0_i32_1 = arith.constant 0 : i32
    return %c0_i32, %c0_i32_0 : i32, i32
  }
  func.func @transform_3(%arg0: i32) -> (i32, i32) {
    %c0_i32 = arith.constant 0 : i32
    %c0_i32_0 = arith.constant 0 : i32
    %c0_i32_1 = arith.constant 0 : i32
    return %c0_i32, %c0_i32_0 : i32, i32
  }
  func.func @transform_4(%arg0: i32) -> (i32, i32) {
    %c0_i32 = arith.constant 0 : i32
    %c0_i32_0 = arith.constant 0 : i32
    %c0_i32_1 = arith.constant 0 : i32
    return %c0_i32, %c0_i32_0 : i32, i32
  }
  func.func @transform_5(%arg0: i32) -> (i32, i32) {
    %c0_i32 = arith.constant 0 : i32
    %c0_i32_0 = arith.constant 0 : i32
    return %arg0, %c0_i32 : i32, i32
  }
}

</mosaic_0001>

<llo_original>
// kernel: tpu_custom_call.1
$region0: #{tpu_custom_call.1}
  #allocation0 [shape = 'u32[]', space=smem, size = 0x4, offset = 0x4, fixed_abs, tag = 'smem constant byte address 0x4 - core index']
  #allocation1 [shape = 'u32[144,128]{1,0:T(1,128)}', space=vmem, size = 0x12000, scoped, tag = 'internal scratch']
  %s0 = inlined_call_operand.hbm [shape: bf16[48,128], index: 0, kind: input, shape index: {}]
  %s1 = inlined_call_operand.hbm [shape: bf16[128,256], index: 1, kind: input, shape index: {}]
  %s2 = inlined_call_operand.vmem [shape: f32[1,256], index: 2, kind: input, shape index: {}]
  %s3 = inlined_call_operand.hbm [shape: bf16[256,128], index: 3, kind: input, shape index: {}]
  %s4 = inlined_call_operand.vmem [shape: f32[1,128], index: 4, kind: input, shape index: {}]
  %s5 = inlined_call_operand.hbm [shape: f32[48,128], index: 5, kind: output, shape index: {}]
  %s6 = sld [smem:[#allocation0]]
  $region42: #{tpu_custom_call.1} parent=0
    _
  %s8 = ssub.s32 1, %s6
  %s9 = scalar_select 0, %s8, %s6
  $region1: #{tpu_custom_call.1} parent=0
    #allocation2 [shape = 'u8[12288]{0}', space=vmem, size = 0x3000, scoped, tag = 'input window, operand 0, single buffered']
    #allocation3 [shape = 's32[1]{0}', space=sflag, size = 0x4, scoped, tag = 'scoped memory for tpu_custom_call.1']
    #allocation4 [shape = 's32[1]{0}', space=sflag, size = 0x4, scoped, tag = 'scoped memory for tpu_custom_call.1']
    #allocation5 [shape = 'u8[65536]{0}', space=vmem, size = 0x10000, scoped, tag = 'input window, operand 1, single buffered']
    #allocation6 [shape = 's32[1]{0}', space=sflag, size = 0x4, scoped, tag = 'scoped memory for tpu_custom_call.1']
    #allocation7 [shape = 'u8[65536]{0}', space=vmem, size = 0x10000, scoped, tag = 'input window, operand 3, single buffered']
    #allocation8 [shape = 'u8[24576]{0}', space=vmem, size = 0x6000, scoped, tag = 'output window, operand 0, single buffered']
    %10 = vsyncpa [#allocation3], 0
    %11 = vsyncpa [#allocation6], 0
    %12 = vsyncpa [#allocation4], 0
    // Predicated region
    $region2: #{tpu_custom_call.1} parent=1 // pred_check
      _
    $region3: #{tpu_custom_call.1} parent=1 // pred_check_branch
      %14 = sbr.rel (0) target = $region5
    $region4: #{tpu_custom_call.1} parent=1 // pred_region
      %s16 = ssub.s32 384, 384
      %17 = vsyncadd [#allocation3], %s16
      %s18 = sshll.u32 [#allocation2], 4
      %s19 = int_to_ptr.vmem [resolvable:$true] %s18
      %24 = dma.hbm_to_vmem [thread:$0]  %s0, 384, %s19, [#allocation3], 64, 64, 4
    $region5: #{tpu_custom_call.1} parent=1 // pred_fallthru
      _
    // Predicated region
    $region6: #{tpu_custom_call.1} parent=1 // pred_check
      _
    $region7: #{tpu_custom_call.1} parent=1 // pred_check_branch
      %26 = sbr.rel (0) target = $region9
    $region8: #{tpu_custom_call.1} parent=1 // pred_region
      %s28 = ssub.s32 2048, 2048
      %29 = vsyncadd [#allocation6], %s28
      %s30 = sshll.u32 [#allocation5], 4
      %s31 = int_to_ptr.vmem [resolvable:$true] %s30
      %36 = dma.hbm_to_vmem [thread:$0]  %s1, 2048, %s31, [#allocation6], 128, 128, 8
    $region9: #{tpu_custom_call.1} parent=1 // pred_fallthru
      _
    // Predicated region
    $region10: #{tpu_custom_call.1} parent=1 // pred_check
      _
    $region11: #{tpu_custom_call.1} parent=1 // pred_check_branch
      %38 = sbr.rel (0) target = $region13
    $region12: #{tpu_custom_call.1} parent=1 // pred_region
      _
    $region13: #{tpu_custom_call.1} parent=1 // pred_fallthru
      _
    // Predicated region
    $region14: #{tpu_custom_call.1} parent=1 // pred_check
      _
    $region15: #{tpu_custom_call.1} parent=1 // pred_check_branch
      %40 = sbr.rel (0) target = $region17
    $region16: #{tpu_custom_call.1} parent=1 // pred_region
      %s42 = ssub.s32 2048, 2048
      %43 = vsyncadd [#allocation6], %s42
      %s44 = sshll.u32 [#allocation7], 4
      %s45 = int_to_ptr.vmem [resolvable:$true] %s44
      %50 = dma.hbm_to_vmem [thread:$0]  %s3, 2048, %s45, [#allocation6], 64, 64, 4
    $region17: #{tpu_custom_call.1} parent=1 // pred_fallthru
      _
    // Predicated region
    $region18: #{tpu_custom_call.1} parent=1 // pred_check
      _
    $region19: #{tpu_custom_call.1} parent=1 // pred_check_branch
      %52 = sbr.rel (0) target = $region21
    $region20: #{tpu_custom_call.1} parent=1 // pred_region
      _
    $region21: #{tpu_custom_call.1} parent=1 // pred_fallthru
      _
    // Predicated region
    $region22: #{tpu_custom_call.1} parent=1 // pred_check
      _
    $region23: #{tpu_custom_call.1} parent=1 // pred_check_branch
      %54 = sbr.rel (0) target = $region25
    $region24: #{tpu_custom_call.1} parent=1 // pred_region
      %55 = dma.done [#allocation3], 384
    $region25: #{tpu_custom_call.1} parent=1 // pred_fallthru
      _
    // Predicated region
    $region26: #{tpu_custom_call.1} parent=1 // pred_check
      _
    $region27: #{tpu_custom_call.1} parent=1 // pred_check_branch
      %57 = sbr.rel (0) target = $region29
    $region28: #{tpu_custom_call.1} parent=1 // pred_region
      %58 = dma.done [#allocation6], 2048
    $region29: #{tpu_custom_call.1} parent=1 // pred_fallthru
      _
    // Predicated region
    $region30: #{tpu_custom_call.1} parent=1 // pred_check
      _
    $region31: #{tpu_custom_call.1} parent=1 // pred_check_branch
      %60 = sbr.rel (0) target = $region33
    $region32: #{tpu_custom_call.1} parent=1 // pred_region
      %61 = dma.done [#allocation6], 2048
    $region33: #{tpu_custom_call.1} parent=1 // pred_fallthru
      _
    %v63 = vld [vmem:[#allocation2] sm:$0xf]
    %v64 = vld [vmem:[#allocation2 + $0x4] sm:$0xf]
    %v65 = vld [vmem:[#allocation2 + $0x8] sm:$0xf]
    %v66 = vld [vmem:[#allocation2 + $0xc] sm:$0xf]
    %v67 = vld [vmem:[#allocation2 + $0x10] sm:$0xf]
    %v68 = vld [vmem:[#allocation2 + $0x14] sm:$0xf]
    %v69 = vld [vmem:[#allocation5] sm:$0xff]
    %v70 = vld [vmem:[#allocation5 + $0x8] sm:$0xff]
    %v71 = vld [vmem:[#allocation5 + $0x10] sm:$0xff]
    %v72 = vld [vmem:[#allocation5 + $0x18] sm:$0xff]
    %v73 = vld [vmem:[#allocation5 + $0x20] sm:$0xff]
    %v74 = vld [vmem:[#allocation5 + $0x28] sm:$0xff]
    %v75 = vld [vmem:[#allocation5 + $0x30] sm:$0xff]
    %v76 = vld [vmem:[#allocation5 + $0x38] sm:$0xff]
    %v77 = vld [vmem:[#allocation5 + $0x40] sm:$0xff]
    %v78 = vld [vmem:[#allocation5 + $0x48] sm:$0xff]
    %v79 = vld [vmem:[#allocation5 + $0x50] sm:$0xff]
    %v80 = vld [vmem:[#allocation5 + $0x58] sm:$0xff]
    %v81 = vld [vmem:[#allocation5 + $0x60] sm:$0xff]
    %v82 = vld [vmem:[#allocation5 + $0x68] sm:$0xff]
    %v83 = vld [vmem:[#allocation5 + $0x70] sm:$0xff]
    %v84 = vld [vmem:[#allocation5 + $0x78] sm:$0xff]
    %v85 = vld [vmem:[%s2] sm:$0x3]
    %v87 = vlaneseq
    %v88 = vshrl.u32 %v87, 7
    %v89 = vsub.s32 0, %v88
    %v90 = vrot.slane %v85, %v89
    %v91 = vlaneseq
    %v92 = vshrl.u32 %v91, 7
    %v93 = vsub.s32 1, %v92
    %v94 = vrot.slane %v85, %v93
    %v103 = vunpack.c.l.b16 %v63
    %v104 = vunpack.c.l.b16 %v64
    %v105 = vunpack.c.l.b16 %v65
    %v106 = vunpack.c.l.b16 %v66
    %v107 = vunpack.c.l.b16 %v67
    %v108 = vunpack.c.l.b16 %v68
    %v109 = vpack.c.b16 %v104, %v103
    %v110 = vpack.c.b16 %v106, %v105
    %v111 = vpack.c.b16 %v108, %v107
    %v131 = vunpack.c.l.b16 %v69
    %v132 = vunpack.c.h.b16 %v69
    %v133 = vunpack.c.l.b16 %v70
    %v134 = vunpack.c.h.b16 %v70
    %v135 = vunpack.c.l.b16 %v71
    %v136 = vunpack.c.h.b16 %v71
    %v137 = vunpack.c.l.b16 %v72
    %v138 = vunpack.c.h.b16 %v72
    %v139 = vunpack.c.l.b16 %v73
    %v140 = vunpack.c.h.b16 %v73
    %v141 = vunpack.c.l.b16 %v74
    %v142 = vunpack.c.h.b16 %v74
    %v143 = vunpack.c.l.b16 %v75
    %v144 = vunpack.c.h.b16 %v75
    %v145 = vunpack.c.l.b16 %v76
    %v146 = vunpack.c.h.b16 %v76
    %v147 = vunpack.c.l.b16 %v77
    %v148 = vunpack.c.h.b16 %v77
    %v149 = vunpack.c.l.b16 %v78
    %v150 = vunpack.c.h.b16 %v78
    %v151 = vunpack.c.l.b16 %v79
    %v152 = vunpack.c.h.b16 %v79
    %v153 = vunpack.c.l.b16 %v80
    %v154 = vunpack.c.h.b16 %v80
    %v155 = vunpack.c.l.b16 %v81
    %v156 = vunpack.c.h.b16 %v81
    %v157 = vunpack.c.l.b16 %v82
    %v158 = vunpack.c.h.b16 %v82
    %v159 = vunpack.c.l.b16 %v83
    %v160 = vunpack.c.h.b16 %v83
    %v161 = vunpack.c.l.b16 %v84
    %v162 = vunpack.c.h.b16 %v84
    %v163 = vpack.c.b16 %v133, %v131
    %v164 = vpack.c.b16 %v134, %v132
    %v165 = vpack.c.b16 %v137, %v135
    %v166 = vpack.c.b16 %v138, %v136
    %v167 = vpack.c.b16 %v141, %v139
    %v168 = vpack.c.b16 %v142, %v140
    %v169 = vpack.c.b16 %v145, %v143
    %v170 = vpack.c.b16 %v146, %v144
    %v171 = vpack.c.b16 %v149, %v147
    %v172 = vpack.c.b16 %v150, %v148
    %v173 = vpack.c.b16 %v153, %v151
    %v174 = vpack.c.b16 %v154, %v152
    %v175 = vpack.c.b16 %v157, %v155
    %v176 = vpack.c.b16 %v158, %v156
    %v177 = vpack.c.b16 %v161, %v159
    %v178 = vpack.c.b16 %v162, %v160
    %195 = vmatprep.subr.bf16.mxu0 %v164
    %196 = vmatpush1.bf16.msra.mxu0 %v163
    %197 = vmatprep.subr.bf16.mxu0 %v166
    %198 = vmatpush1.bf16.msra.mxu0 %v165
    %199 = vmatprep.subr.bf16.mxu0 %v168
    %200 = vmatpush1.bf16.msra.mxu0 %v167
    %201 = vmatprep.subr.bf16.mxu0 %v170
    %202 = vmatpush1.bf16.msra.mxu0 %v169
    %203 = vmatprep.subr.bf16.mxu0 %v172
    %204 = vmatpush1.bf16.msra.mxu0 %v171
    %205 = vmatprep.subr.bf16.mxu0 %v174
    %206 = vmatpush1.bf16.msra.mxu0 %v173
    %207 = vmatprep.subr.bf16.mxu0 %v176
    %208 = vmatpush1.bf16.msra.mxu0 %v175
    %209 = vmatprep.subr.bf16.mxu0 %v178
    %210 = vmatpush1.bf16.msra.mxu0 %v177
    %211 = vmatprep.subr.bf16.mxu0 0
    %212 = vmatpush1.bf16.msra.mxu0 0
    %213 = vmatprep.subr.bf16.mxu0 0
    %214 = vmatpush1.bf16.msra.mxu0 0
    %215 = vmatprep.subr.bf16.mxu0 0
    %216 = vmatpush1.bf16.msra.mxu0 0
    %217 = vmatprep.subr.bf16.mxu0 0
    %218 = vmatpush1.bf16.msra.mxu0 0
    %219 = vmatprep.subr.bf16.mxu0 0
    %220 = vmatpush1.bf16.msra.mxu0 0
    %221 = vmatprep.subr.bf16.mxu0 0
    %222 = vmatpush1.bf16.msra.mxu0 0
    %223 = vmatprep.subr.bf16.mxu0 0
    %224 = vmatpush1.bf16.msra.mxu0 0
    %225 = vmatprep.subr.bf16.mxu0 0
    %226 = vmatpush1.bf16.msra.mxu0 0
    %227 = vmatprep.mubr.bf16.mxu0 0
    %228 = vmatmul.mubr.bf16.gmra.mrb[0].mxu0 %v109
    %v229 = vpop.f32.mrb[0].mxu0
    %v230 = vadd.f32 %v90, %v229
    %v231 = vpop.f32.mrb[0].mxu0
    %v232 = vadd.f32 %v94, %v231
    %v233 = vpop.f32.mrb[0].mxu0
    %v234 = vadd.f32 %v90, %v233
    %v235 = vpop.f32.mrb[0].mxu0
    %v236 = vadd.f32 %v94, %v235
    %237 = vmatprep.mubr.bf16.mxu0 0
    %238 = vmatmul.mubr.bf16.gmra.mrb[0].mxu0 %v110
    %v239 = vpop.f32.mrb[0].mxu0
    %v240 = vadd.f32 %v90, %v239
    %v241 = vpop.f32.mrb[0].mxu0
    %v242 = vadd.f32 %v94, %v241
    %v243 = vpop.f32.mrb[0].mxu0
    %v244 = vadd.f32 %v90, %v243
    %v245 = vpop.f32.mrb[0].mxu0
    %v246 = vadd.f32 %v94, %v245
    %247 = vmatprep.mubr.bf16.mxu0 0
    %248 = vmatmul.mubr.bf16.gmra.mrb[0].mxu0 %v111
    %v249 = vpop.f32.mrb[0].mxu0
    %v250 = vadd.f32 %v90, %v249
    %v251 = vpop.f32.mrb[0].mxu0
    %v252 = vadd.f32 %v94, %v251
    %v253 = vpop.f32.mrb[0].mxu0
    %v254 = vadd.f32 %v90, %v253
    %v255 = vpop.f32.mrb[0].mxu0
    %v256 = vadd.f32 %v94, %v255
    %257 = vdwg.mxu0
    %v258 = vmax.f32 %v230, 0.0
    %v259 = vmax.f32 %v232, 0.0
    %v260 = vmax.f32 %v234, 0.0
    %v261 = vmax.f32 %v236, 0.0
    %v262 = vmax.f32 %v240, 0.0
    %v263 = vmax.f32 %v242, 0.0
    %v264 = vmax.f32 %v244, 0.0
    %v265 = vmax.f32 %v246, 0.0
    %v266 = vmax.f32 %v250, 0.0
    %v267 = vmax.f32 %v252, 0.0
    %v268 = vmax.f32 %v254, 0.0
    %v269 = vmax.f32 %v256, 0.0
    %v270 = vpack.c.bf16 %v260, %v258
    %v271 = vpack.c.bf16 %v261, %v259
    %v272 = vpack.c.bf16 %v264, %v262
    %v273 = vpack.c.bf16 %v265, %v263
    %v274 = vpack.c.bf16 %v268, %v266
    %v275 = vpack.c.bf16 %v269, %v267
    %v276 = vld [vmem:[#allocation7] sm:$0xf]
    %v277 = vld [vmem:[#allocation7 + $0x4] sm:$0xf]
    %v278 = vld [vmem:[#allocation7 + $0x8] sm:$0xf]
    %v279 = vld [vmem:[#allocation7 + $0xc] sm:$0xf]
    %v280 = vld [vmem:[#allocation7 + $0x10] sm:$0xf]
    %v281 = vld [vmem:[#allocation7 + $0x14] sm:$0xf]
    %v282 = vld [vmem:[#allocation7 + $0x18] sm:$0xf]
    %v283 = vld [vmem:[#allocation7 + $0x1c] sm:$0xf]
    %v284 = vld [vmem:[#allocation7 + $0x20] sm:$0xf]
    %v285 = vld [vmem:[#allocation7 + $0x24] sm:$0xf]
    %v286 = vld [vmem:[#allocation7 + $0x28] sm:$0xf]
    %v287 = vld [vmem:[#allocation7 + $0x2c] sm:$0xf]
    %v288 = vld [vmem:[#allocation7 + $0x30] sm:$0xf]
    %v289 = vld [vmem:[#allocation7 + $0x34] sm:$0xf]
    %v290 = vld [vmem:[#allocation7 + $0x38] sm:$0xf]
    %v291 = vld [vmem:[#allocation7 + $0x3c] sm:$0xf]
    %v292 = vld [vmem:[#allocation7 + $0x40] sm:$0xf]
    %v293 = vld [vmem:[#allocation7 + $0x44] sm:$0xf]
    %v294 = vld [vmem:[#allocation7 + $0x48] sm:$0xf]
    %v295 = vld [vmem:[#allocation7 + $0x4c] sm:$0xf]
    %v296 = vld [vmem:[#allocation7 + $0x50] sm:$0xf]
    %v297 = vld [vmem:[#allocation7 + $0x54] sm:$0xf]
    %v298 = vld [vmem:[#allocation7 + $0x58] sm:$0xf]
    %v299 = vld [vmem:[#allocation7 + $0x5c] sm:$0xf]
    %v300 = vld [vmem:[#allocation7 + $0x60] sm:$0xf]
    %v301 = vld [vmem:[#allocation7 + $0x64] sm:$0xf]
    %v302 = vld [vmem:[#allocation7 + $0x68] sm:$0xf]
    %v303 = vld [vmem:[#allocation7 + $0x6c] sm:$0xf]
    %v304 = vld [vmem:[#allocation7 + $0x70] sm:$0xf]
    %v305 = vld [vmem:[#allocation7 + $0x74] sm:$0xf]
    %v306 = vld [vmem:[#allocation7 + $0x78] sm:$0xf]
    %v307 = vld [vmem:[#allocation7 + $0x7c] sm:$0xf]
    %v308 = vld [vmem:[%s4] sm:$0x1]
    %v310 = vlaneseq
    %v311 = vshrl.u32 %v310, 7
    %v312 = vsub.s32 0, %v311
    %v313 = vrot.slane %v308, %v312
    %v347 = vunpack.c.l.b16 %v276
    %v348 = vunpack.c.l.b16 %v277
    %v349 = vunpack.c.l.b16 %v278
    %v350 = vunpack.c.l.b16 %v279
    %v351 = vunpack.c.l.b16 %v280
    %v352 = vunpack.c.l.b16 %v281
    %v353 = vunpack.c.l.b16 %v282
    %v354 = vunpack.c.l.b16 %v283
    %v355 = vunpack.c.l.b16 %v284
    %v356 = vunpack.c.l.b16 %v285
    %v357 = vunpack.c.l.b16 %v286
    %v358 = vunpack.c.l.b16 %v287
    %v359 = vunpack.c.l.b16 %v288
    %v360 = vunpack.c.l.b16 %v289
    %v361 = vunpack.c.l.b16 %v290
    %v362 = vunpack.c.l.b16 %v291
    %v363 = vunpack.c.l.b16 %v292
    %v364 = vunpack.c.l.b16 %v293
    %v365 = vunpack.c.l.b16 %v294
    %v366 = vunpack.c.l.b16 %v295
    %v367 = vunpack.c.l.b16 %v296
    %v368 = vunpack.c.l.b16 %v297
    %v369 = vunpack.c.l.b16 %v298
    %v370 = vunpack.c.l.b16 %v299
    %v371 = vunpack.c.l.b16 %v300
    %v372 = vunpack.c.l.b16 %v301
    %v373 = vunpack.c.l.b16 %v302
    %v374 = vunpack.c.l.b16 %v303
    %v375 = vunpack.c.l.b16 %v304
    %v376 = vunpack.c.l.b16 %v305
    %v377 = vunpack.c.l.b16 %v306
    %v378 = vunpack.c.l.b16 %v307
    %v379 = vpack.c.b16 %v348, %v347
    %v380 = vpack.c.b16 %v350, %v349
    %v381 = vpack.c.b16 %v352, %v351
    %v382 = vpack.c.b16 %v354, %v353
    %v383 = vpack.c.b16 %v356, %v355
    %v384 = vpack.c.b16 %v358, %v357
    %v385 = vpack.c.b16 %v360, %v359
    %v386 = vpack.c.b16 %v362, %v361
    %v387 = vpack.c.b16 %v364, %v363
    %v388 = vpack.c.b16 %v366, %v365
    %v389 = vpack.c.b16 %v368, %v367
    %v390 = vpack.c.b16 %v370, %v369
    %v391 = vpack.c.b16 %v372, %v371
    %v392 = vpack.c.b16 %v374, %v373
    %v393 = vpack.c.b16 %v376, %v375
    %v394 = vpack.c.b16 %v378, %v377
    %411 = vmatprep.subr.bf16.mxu0 0
    %412 = vmatpush1.bf16.msra.mxu0 %v379
    %413 = vmatprep.subr.bf16.mxu0 0
    %414 = vmatpush1.bf16.msra.mxu0 %v380
    %415 = vmatprep.subr.bf16.mxu0 0
    %416 = vmatpush1.bf16.msra.mxu0 %v381
    %417 = vmatprep.subr.bf16.mxu0 0
    %418 = vmatpush1.bf16.msra.mxu0 %v382
    %419 = vmatprep.subr.bf16.mxu0 0
    %420 = vmatpush1.bf16.msra.mxu0 %v383
    %421 = vmatprep.subr.bf16.mxu0 0
    %422 = vmatpush1.bf16.msra.mxu0 %v384
    %423 = vmatprep.subr.bf16.mxu0 0
    %424 = vmatpush1.bf16.msra.mxu0 %v385
    %425 = vmatprep.subr.bf16.mxu0 0
    %426 = vmatpush1.bf16.msra.mxu0 %v386
    %427 = vmatprep.subr.bf16.mxu0 0
    %428 = vmatpush1.bf16.msra.mxu0 %v387
    %429 = vmatprep.subr.bf16.mxu0 0
    %430 = vmatpush1.bf16.msra.mxu0 %v388
    %431 = vmatprep.subr.bf16.mxu0 0
    %432 = vmatpush1.bf16.msra.mxu0 %v389
    %433 = vmatprep.subr.bf16.mxu0 0
    %434 = vmatpush1.bf16.msra.mxu0 %v390
    %435 = vmatprep.subr.bf16.mxu0 0
    %436 = vmatpush1.bf16.msra.mxu0 %v391
    %437 = vmatprep.subr.bf16.mxu0 0
    %438 = vmatpush1.bf16.msra.mxu0 %v392
    %439 = vmatprep.subr.bf16.mxu0 0
    %440 = vmatpush1.bf16.msra.mxu0 %v393
    %441 = vmatprep.subr.bf16.mxu0 0
    %442 = vmatpush1.bf16.msra.mxu0 %v394
    %443 = vmatprep.mubr.bf16.mxu0 %v271
    %444 = vmatmul.mubr.bf16.gmra.mrb[0].mxu0 %v270
    %v445 = vpop.f32.mrb[0].mxu0
    %v446 = vadd.f32 %v313, %v445
    %v447 = vpop.f32.mrb[0].mxu0
    %v448 = vpop.f32.mrb[0].mxu0
    %v449 = vadd.f32 %v313, %v448
    %v450 = vpop.f32.mrb[0].mxu0
    %451 = vmatprep.mubr.bf16.mxu0 %v273
    %452 = vmatmul.mubr.bf16.gmra.mrb[0].mxu0 %v272
    %v453 = vpop.f32.mrb[0].mxu0
    %v454 = vadd.f32 %v313, %v453
    %v455 = vpop.f32.mrb[0].mxu0
    %v456 = vpop.f32.mrb[0].mxu0
    %v457 = vadd.f32 %v313, %v456
    %v458 = vpop.f32.mrb[0].mxu0
    %459 = vmatprep.mubr.bf16.mxu0 %v275
    %460 = vmatmul.mubr.bf16.gmra.mrb[0].mxu0 %v274
    %v461 = vpop.f32.mrb[0].mxu0
    %v462 = vadd.f32 %v313, %v461
    %v463 = vpop.f32.mrb[0].mxu0
    %v464 = vpop.f32.mrb[0].mxu0
    %v465 = vadd.f32 %v313, %v464
    %v466 = vpop.f32.mrb[0].mxu0
    %467 = vdwg.mxu0
    %468 = vst [vmem:[#allocation8] sm:$0xff] %v446
    %469 = vst [vmem:[#allocation8 + $0x8] sm:$0xff] %v449
    %470 = vst [vmem:[#allocation8 + $0x10] sm:$0xff] %v454
    %471 = vst [vmem:[#allocation8 + $0x18] sm:$0xff] %v457
    %472 = vst [vmem:[#allocation8 + $0x20] sm:$0xff] %v462
    %473 = vst [vmem:[#allocation8 + $0x28] sm:$0xff] %v465
    // Predicated region
    $region34: #{tpu_custom_call.1} parent=1 // pred_check
      _
    $region35: #{tpu_custom_call.1} parent=1 // pred_check_branch
      %475 = sbr.rel (0) target = $region37
    $region36: #{tpu_custom_call.1} parent=1 // pred_region
      %s477 = ssub.s32 768, 768
      %478 = vsyncadd [#allocation4], %s477
      %s479 = sshll.u32 [#allocation8], 4
      %s480 = int_to_ptr.vmem [resolvable:$true] %s479
      %485 = dma.vmem_to_hbm [thread:$0]  %s480, 768, %s5, [#allocation4], 128, 128, 8
    $region37: #{tpu_custom_call.1} parent=1 // pred_fallthru
      _
    // Predicated region
    $region38: #{tpu_custom_call.1} parent=1 // pred_check
      _
    $region39: #{tpu_custom_call.1} parent=1 // pred_check_branch
      %487 = sbr.rel (0) target = $region41
    $region40: #{tpu_custom_call.1} parent=1 // pred_region
      %488 = dma.done [#allocation4], 768
    $region41: #{tpu_custom_call.1} parent=1 // pred_fallthru
      _
    %489 = vsyncpa [#allocation3], 1
    %490 = vsyncpa [#allocation6], 1
    %491 = vsyncpa [#allocation4], 1

</llo_original>
